<compile_context>
chip_gen: v7x
topology: tpu7x:2x2x1
jax: 0.10.0
libtpu: 0.0.40
codegen_flags: <defaults>
</compile_context>

<pallas_src>
import jax
import jax.numpy as jnp
from jax.experimental import pallas as pl
from jax.experimental.pallas import tpu as pltpu


def _round_up(a, b):
    return -(-a // b) * b


def _criterion_kernel(x_ref, aux_ref, num_ref, den_ref, acc_n_ref, acc_d_ref):
    i = pl.program_id(1)

    @pl.when(i == 0)
    def _():
        acc_n_ref[...] = jnp.zeros_like(acc_n_ref)
        acc_d_ref[...] = jnp.zeros_like(acc_d_ref)

    x = x_ref[...].astype(jnp.float32)        # (T, W) native dtype -> f32 once
    packed = aux_ref[...]                     # (T, F) int32 = (t_lane << 16) | bf16(w)
    t_all = packed >> 16                      # arithmetic shift; -1 == "select nothing"
    w_all = pltpu.bitcast((packed & 0xFFFF) << 16, jnp.float32)  # bf16 weight -> f32

    T, W = x.shape
    F = t_all.shape[1]
    lane = jax.lax.broadcasted_iota(jnp.int32, (T, W), 1)

    # Gather-equivalent selection: select x by lane match FIRST (non-finite values
    # in non-selected classes never reach the sum), lane-reduce on the idle XLU,
    # then weight the tiny (T, 1) column.
    picked_w = jnp.zeros((T, 1), jnp.float32)
    for s in range(F):                        # static, small (F = 128 // C_pad, capped)
        t_s = t_all[:, s:s + 1]                             # (T, 1)
        sel = jnp.where(lane == t_s, x, 0.0)                # (T, W)
        picked = jnp.sum(sel, axis=1, keepdims=True)        # (T, 1) == x[row, target]
        picked_w = picked_w + picked * w_all[:, s:s + 1]

    # Per-step reduction straight into scalar accumulators: same VALU add count as a
    # big accumulator "+=", but no tile_rows-sized scratch and no acc ld/st traffic.
    acc_n_ref[...] += jnp.sum(picked_w, keepdims=True)
    acc_d_ref[...] += jnp.sum(w_all, keepdims=True)

    @pl.when(i == pl.num_programs(1) - 1)
    def _():
        num_ref[...] = (-acc_n_ref[...]).reshape(1, 1, 1)
        den_ref[...] = acc_d_ref[...].reshape(1, 1, 1)


def classifier_criterion(inp, target, mask, class_mask=None, *,
                         tile_rows=4096, num_partials=1):
    """Pallas implementation of ClassiferCriterion.forward."""
    m, L, C = inp.shape
    N = m * L

    # shifted target: cat(target[:, 1:], target[:, :1], dim=1)   (plain-JAX glue)
    target_s = jnp.concatenate([target[:, 1:], target[:, :1]], axis=1)

    # fuse the two masks into one weight column (1 aux stream instead of 2-3)
    w = mask.astype(jnp.float32)
    if class_mask is not None:
        w = w * class_mask.astype(jnp.float32)

    x = inp.reshape(N, C)                      # keep native dtype (bf16 stays bf16)
    t = target_s.reshape(N).astype(jnp.int32)
    w = w.reshape(N)

    # --- lane-dense layout ---------------------------------------------------
    # Pad the class dim to a power of two (divides 128) or a multiple of 128, then
    # fold `fold` consecutive rows into one 128-wide lane row. Padded class columns
    # are never selected (targets are checked against the ORIGINAL C).
    if C < 128:
        C_pad = 1
        while C_pad < C:
            C_pad *= 2
        fold = min(128 // C_pad, 16)           # cap the static per-slot loop
    else:
        C_pad = _round_up(C, 128)
        fold = 1
    W = fold * C_pad

    # --- tile sizing -----------------------------------------------------------
    # VMEM per folded row, double-buffered: x block + lane-padded (T, fold) int32 aux.
    dtype_bytes = jnp.dtype(x.dtype).itemsize
    per_row = 2 * max(W, 128) * dtype_bytes + 2 * 128 * 4
    budget = 14 * 1024 * 1024                  # fits v7x 32 MiB scoped VMEM w/ headroom
    row_mult = 16                              # bf16 sublane packing
    R = -(-N // fold)                          # folded rows needed
    max_rows = max(row_mult, (budget // per_row) // row_mult * row_mult)
    tile_rows = min(int(tile_rows), max_rows, _round_up(R, row_mult))
    tile_rows = max(row_mult, _round_up(tile_rows, row_mult))

    # pad folded rows so they split evenly into num_partials chunks of whole tiles
    chunk_tiles = max(1, -(-R // (tile_rows * num_partials)))
    R_pad = chunk_tiles * tile_rows * num_partials
    N_pad = R_pad * fold
    pad_rows = N_pad - N

    x = jnp.pad(x, ((0, pad_rows), (0, C_pad - C)))
    t = jnp.pad(t, ((0, pad_rows),), constant_values=-1)
    w = jnp.pad(w, ((0, pad_rows),))           # padded rows contribute nothing

    # picked lane index inside the folded 128-wide row; -1 == pick nothing
    # (out-of-range targets keep their weight in the denominator, as before).
    slot = jnp.arange(N_pad, dtype=jnp.int32) % fold
    valid = (t >= 0) & (t < C)
    t_lane = jnp.where(valid, slot * C_pad + t, -1)

    # pack (int16 target lane | bf16 weight) into ONE int32 aux stream.
    # NOTE: weights are rounded to bf16 (exact for the usual 0/1 masks).
    w_bits = jax.lax.bitcast_convert_type(w.astype(jnp.bfloat16),
                                          jnp.uint16).astype(jnp.int32)
    packed = (t_lane << 16) | w_bits

    x = x.reshape(R_pad, W)
    packed = packed.reshape(R_pad, fold)

    num_parts, den_parts = pl.pallas_call(
        _criterion_kernel,
        out_shape=(jax.ShapeDtypeStruct((num_partials, 1, 1), jnp.float32),
                   jax.ShapeDtypeStruct((num_partials, 1, 1), jnp.float32)),
        grid_spec=pltpu.PrefetchScalarGridSpec(
            num_scalar_prefetch=0,
            grid=(num_partials, chunk_tiles),
            in_specs=[
                pl.BlockSpec((tile_rows, W),
                             lambda p, i: (p * chunk_tiles + i, 0)),
                pl.BlockSpec((tile_rows, fold),
                             lambda p, i: (p * chunk_tiles + i, 0)),
            ],
            out_specs=(
                pl.BlockSpec((1, 1, 1), lambda p, i: (p, 0, 0)),
                pl.BlockSpec((1, 1, 1), lambda p, i: (p, 0, 0)),
            ),
            scratch_shapes=[
                pltpu.VMEM((1, 1), jnp.float32),
                pltpu.VMEM((1, 1), jnp.float32),
            ],
        ),
        compiler_params=pltpu.CompilerParams(
            dimension_semantics=("parallel", "arbitrary"),
            vmem_limit_bytes=32 * 1024 * 1024),
    )(x, packed)

    num = jnp.sum(num_parts)
    den = jnp.sum(den_parts)
    # NOTE: like the PyTorch reference, no guard against sum(mask*class_mask)==0.
    return num / den


def _reference(inp, target, mask, class_mask=None):
    m, L, C = inp.shape
    target_s = jnp.concatenate([target[:, 1:], target[:, :1]], axis=1)
    x = inp.reshape(-1, C).astype(jnp.float32)
    t = target_s.reshape(-1)
    mk = mask.reshape(-1).astype(jnp.float32)
    picked = jnp.take_along_axis(x, t[:, None], axis=1)[:, 0]
    out = -1.0 * picked * mk
    if class_mask is None:
        return jnp.sum(out) / jnp.sum(mk)
    cm = class_mask.reshape(-1).astype(jnp.float32)
    return jnp.sum(out * cm) / jnp.sum(mk * cm)


if __name__ == "__main__":
    key = jax.random.PRNGKey(0)
    m, L, C = 2, 8, 32          # m=2, seq_len+1=8, n_classes=32
    k1, k2, k3, k4, k5, k6, k7, k8, k9, k10 = jax.random.split(key, 10)

    logits = jax.random.normal(k1, (m, L, C), dtype=jnp.float32)
    log_probs = jax.nn.log_softmax(logits, axis=-1)            # input
    target = jax.random.randint(k2, (m, L), 0, C, dtype=jnp.int32)
    mask = (jax.random.uniform(k3, (m, L)) > 0.3).astype(jnp.float32)
    class_mask = (jax.random.uniform(k4, (m, L)) > 0.2).astype(jnp.float32)

    # 1) class_mask=None
    loss_a = classifier_criterion(log_probs, target, mask)
    # 2) with class_mask
    loss_b = classifier_criterion(log_probs, target, mask, class_mask)
    # 3) native bf16 activations streamed without a wrapper f32 copy
    lp_bf16 = log_probs.astype(jnp.bfloat16)
    loss_c = classifier_criterion(lp_bf16, target, mask, class_mask)
    # 4) -inf scores in never-selected classes must NOT poison the sum
    target_nz = jax.random.randint(k5, (m, L), 1, C, dtype=jnp.int32)
    lp_inf = log_probs.at[:, :, 0].set(-jnp.inf)
    loss_d = classifier_criterion(lp_inf, target_nz, mask, class_mask)
    # 5) class count that is neither a power of two nor a multiple of 128
    C2 = 45
    logits2 = jax.random.normal(k6, (m, L, C2), dtype=jnp.float32)
    lp2 = jax.nn.log_softmax(logits2, axis=-1)
    target2 = jax.random.randint(k7, (m, L), 0, C2, dtype=jnp.int32)
    loss_e = classifier_criterion(lp2, target2, mask, class_mask)
    # 6) multi-step grid + partials path (small tile forced)
    m2, L2 = 4, 40
    logits3 = jax.random.normal(k8, (m2, L2, C), dtype=jnp.float32)
    lp3 = jax.nn.log_softmax(logits3, axis=-1)
    target3 = jax.random.randint(k9, (m2, L2), 0, C, dtype=jnp.int32)
    mask3 = (jax.random.uniform(k10, (m2, L2)) > 0.3).astype(jnp.float32)
    loss_f = classifier_criterion(lp3, target3, mask3, tile_rows=16, num_partials=2)

    jax.block_until_ready((loss_a, loss_b, loss_c, loss_d, loss_e, loss_f))

    ref_a = _reference(log_probs, target, mask)
    ref_b = _reference(log_probs, target, mask, class_mask)
    ref_c = _reference(lp_bf16.astype(jnp.float32), target, mask, class_mask)
    ref_d = _reference(lp_inf, target_nz, mask, class_mask)
    ref_e = _reference(lp2, target2, mask, class_mask)
    ref_f = _reference(lp3, target3, mask3)

    assert jnp.allclose(loss_a, ref_a, rtol=1e-5, atol=1e-5)
    assert jnp.allclose(loss_b, ref_b, rtol=1e-5, atol=1e-5)
    assert jnp.allclose(loss_c, ref_c, rtol=1e-3, atol=1e-3)
    assert bool(jnp.isfinite(loss_d))
    assert jnp.allclose(loss_d, ref_d, rtol=1e-5, atol=1e-5)
    assert jnp.allclose(loss_e, ref_e, rtol=1e-5, atol=1e-5)
    assert jnp.allclose(loss_f, ref_f, rtol=1e-5, atol=1e-5)
    print("KERNEL_OK")
</pallas_src>

<mosaic_0001>
module attributes {stable_mosaic.version = 11 : i64} {
  func.func @_criterion_kernel(%arg0: i32, %arg1: i32, %arg2: memref<16x128xf32, #tpu.memory_space<vmem>>, %arg3: memref<16x4xi32, #tpu.memory_space<vmem>>, %arg4: memref<1x1x1xf32, #tpu.memory_space<vmem>>, %arg5: memref<1x1x1xf32, #tpu.memory_space<vmem>>, %arg6: memref<1x1xf32, #tpu.memory_space<vmem>>, %arg7: memref<1x1xf32, #tpu.memory_space<vmem>>) attributes {dimension_semantics = [#tpu.dimension_semantics<parallel>, #tpu.dimension_semantics<arbitrary>], iteration_bounds = array<i64: 1, 1>, scalar_prefetch = 0 : i64, scratch_operands = 2 : i64, tpu.core_type = #tpu.core_type<tc>, window_params = [{transform_indices = @transform_0, window_bounds = array<i64: 16, 128>}, {transform_indices = @transform_1, window_bounds = array<i64: 16, 4>}, {transform_indices = @transform_2, window_bounds = array<i64: 1, 1, 1>}, {transform_indices = @transform_3, window_bounds = array<i64: 1, 1, 1>}]} {
    %c0_i32 = arith.constant 0 : i32
    %0 = arith.cmpi eq, %arg1, %c0_i32 : i32
    %1 = arith.extui %0 : i1 to i32
    %c0_i32_0 = arith.constant 0 : i32
    %2 = arith.cmpi ne, %1, %c0_i32_0 : i32
    scf.if %2 {
      %cst_25 = arith.constant 0.000000e+00 : f32
      %73 = vector.broadcast %cst_25 : f32 to vector<1x1xf32>
      %c0_26 = arith.constant 0 : index
      %c0_27 = arith.constant 0 : index
      %74 = vector.load %arg6[%c0_26, %c0_27] : memref<1x1xf32, #tpu.memory_space<vmem>>, vector<1x1xf32>
      tpu.vector_store %arg6[%c0_26, %c0_27], %73 {strides = array<i32>} : memref<1x1xf32, #tpu.memory_space<vmem>>, vector<1x1xf32>,
      %cst_28 = arith.constant 0.000000e+00 : f32
      %75 = vector.broadcast %cst_28 : f32 to vector<1x1xf32>
      %c0_29 = arith.constant 0 : index
      %c0_30 = arith.constant 0 : index
      %76 = vector.load %arg7[%c0_29, %c0_30] : memref<1x1xf32, #tpu.memory_space<vmem>>, vector<1x1xf32>
      tpu.vector_store %arg7[%c0_29, %c0_30], %75 {strides = array<i32>} : memref<1x1xf32, #tpu.memory_space<vmem>>, vector<1x1xf32>,
    } else {
    }
    %c0 = arith.constant 0 : index
    %c0_1 = arith.constant 0 : index
    %3 = vector.load %arg2[%c0, %c0_1] : memref<16x128xf32, #tpu.memory_space<vmem>>, vector<16x128xf32>
    %c0_2 = arith.constant 0 : index
    %c0_3 = arith.constant 0 : index
    %4 = vector.load %arg3[%c0_2, %c0_3] : memref<16x4xi32, #tpu.memory_space<vmem>>, vector<16x4xi32>
    %c16_i32 = arith.constant 16 : i32
    %5 = vector.broadcast %c16_i32 : i32 to vector<16x4xi32>
    %6 = arith.shrsi %4, %5 : vector<16x4xi32>
    %c65535_i32 = arith.constant 65535 : i32
    %7 = vector.broadcast %c65535_i32 : i32 to vector<16x4xi32>
    %8 = arith.andi %4, %7 : vector<16x4xi32>
    %c16_i32_4 = arith.constant 16 : i32
    %9 = vector.broadcast %c16_i32_4 : i32 to vector<16x4xi32>
    %10 = arith.shli %8, %9 : vector<16x4xi32>
    %11 = tpu.bitcast %10 : vector<16x4xi32> -> vector<16x4xf32>
    %12 = tpu.iota {dimensions = array<i32: 1>} : vector<16x128xi32>
    %cst = arith.constant 0.000000e+00 : f32
    %13 = vector.broadcast %cst : f32 to vector<16x1xf32>
    %14 = vector.extract_strided_slice %6 {offsets = [0, 0], sizes = [16, 1], strides = [1, 1]} : vector<16x4xi32> to vector<16x1xi32>
    %15 = vector.broadcast %14 : vector<16x1xi32> to vector<16x128xi32>
    %16 = arith.cmpi eq, %12, %15 : vector<16x128xi32>
    %cst_5 = arith.constant 0.000000e+00 : f32
    %17 = vector.broadcast %cst_5 : f32 to vector<16x128xf32>
    %18 = arith.select %16, %3, %17 : vector<16x128xi1>, vector<16x128xf32>
    %cst_6 = arith.constant dense<0.000000e+00> : vector<16xf32>
    %19 = vector.multi_reduction <add>, %18, %cst_6 [1] : vector<16x128xf32> to vector<16xf32>
    %20 = vector.shape_cast %19 : vector<16xf32> to vector<16x1xf32>
    %21 = vector.extract_strided_slice %11 {offsets = [0, 0], sizes = [16, 1], strides = [1, 1]} : vector<16x4xf32> to vector<16x1xf32>
    %22 = arith.mulf %20, %21 : vector<16x1xf32>
    %23 = arith.addf %13, %22 : vector<16x1xf32>
    %24 = vector.extract_strided_slice %6 {offsets = [0, 1], sizes = [16, 1], strides = [1, 1]} : vector<16x4xi32> to vector<16x1xi32>
    %25 = vector.broadcast %24 : vector<16x1xi32> to vector<16x128xi32>
    %26 = arith.cmpi eq, %12, %25 : vector<16x128xi32>
    %cst_7 = arith.constant 0.000000e+00 : f32
    %27 = vector.broadcast %cst_7 : f32 to vector<16x128xf32>
    %28 = arith.select %26, %3, %27 : vector<16x128xi1>, vector<16x128xf32>
    %cst_8 = arith.constant dense<0.000000e+00> : vector<16xf32>
    %29 = vector.multi_reduction <add>, %28, %cst_8 [1] : vector<16x128xf32> to vector<16xf32>
    %30 = vector.shape_cast %29 : vector<16xf32> to vector<16x1xf32>
    %31 = vector.extract_strided_slice %11 {offsets = [0, 1], sizes = [16, 1], strides = [1, 1]} : vector<16x4xf32> to vector<16x1xf32>
    %32 = arith.mulf %30, %31 : vector<16x1xf32>
    %33 = arith.addf %23, %32 : vector<16x1xf32>
    %34 = vector.extract_strided_slice %6 {offsets = [0, 2], sizes = [16, 1], strides = [1, 1]} : vector<16x4xi32> to vector<16x1xi32>
    %35 = vector.broadcast %34 : vector<16x1xi32> to vector<16x128xi32>
    %36 = arith.cmpi eq, %12, %35 : vector<16x128xi32>
    %cst_9 = arith.constant 0.000000e+00 : f32
    %37 = vector.broadcast %cst_9 : f32 to vector<16x128xf32>
    %38 = arith.select %36, %3, %37 : vector<16x128xi1>, vector<16x128xf32>
    %cst_10 = arith.constant dense<0.000000e+00> : vector<16xf32>
    %39 = vector.multi_reduction <add>, %38, %cst_10 [1] : vector<16x128xf32> to vector<16xf32>
    %40 = vector.shape_cast %39 : vector<16xf32> to vector<16x1xf32>
    %41 = vector.extract_strided_slice %11 {offsets = [0, 2], sizes = [16, 1], strides = [1, 1]} : vector<16x4xf32> to vector<16x1xf32>
    %42 = arith.mulf %40, %41 : vector<16x1xf32>
    %43 = arith.addf %33, %42 : vector<16x1xf32>
    %44 = vector.extract_strided_slice %6 {offsets = [0, 3], sizes = [16, 1], strides = [1, 1]} : vector<16x4xi32> to vector<16x1xi32>
    %45 = vector.broadcast %44 : vector<16x1xi32> to vector<16x128xi32>
    %46 = arith.cmpi eq, %12, %45 : vector<16x128xi32>
    %cst_11 = arith.constant 0.000000e+00 : f32
    %47 = vector.broadcast %cst_11 : f32 to vector<16x128xf32>
    %48 = arith.select %46, %3, %47 : vector<16x128xi1>, vector<16x128xf32>
    %cst_12 = arith.constant dense<0.000000e+00> : vector<16xf32>
    %49 = vector.multi_reduction <add>, %48, %cst_12 [1] : vector<16x128xf32> to vector<16xf32>
    %50 = vector.shape_cast %49 : vector<16xf32> to vector<16x1xf32>
    %51 = vector.extract_strided_slice %11 {offsets = [0, 3], sizes = [16, 1], strides = [1, 1]} : vector<16x4xf32> to vector<16x1xf32>
    %52 = arith.mulf %50, %51 : vector<16x1xf32>
    %53 = arith.addf %43, %52 : vector<16x1xf32>
    %c0_13 = arith.constant 0 : index
    %c0_14 = arith.constant 0 : index
    %54 = vector.load %arg6[%c0_13, %c0_14] : memref<1x1xf32, #tpu.memory_space<vmem>>, vector<1x1xf32>
    %55 = vector.shape_cast %53 : vector<16x1xf32> to vector<1x16x1xf32>
    %cst_15 = arith.constant dense<0.000000e+00> : vector<1xf32>
    %56 = vector.multi_reduction <add>, %55, %cst_15 [1, 2] : vector<1x16x1xf32> to vector<1xf32>
    %57 = vector.shape_cast %56 : vector<1xf32> to vector<1x1x1xf32>
    %58 = vector.extract %57[0, 0, 0] : f32 from vector<1x1x1xf32>
    %59 = vector.broadcast %58 : f32 to vector<1x1xf32>
    %60 = arith.addf %54, %59 : vector<1x1xf32>
    %c0_16 = arith.constant 0 : index
    %c0_17 = arith.constant 0 : index
    %61 = vector.load %arg6[%c0_16, %c0_17] : memref<1x1xf32, #tpu.memory_space<vmem>>, vector<1x1xf32>
    tpu.vector_store %arg6[%c0_16, %c0_17], %60 {strides = array<i32>} : memref<1x1xf32, #tpu.memory_space<vmem>>, vector<1x1xf32>,
    %c0_18 = arith.constant 0 : index
    %c0_19 = arith.constant 0 : index
    %62 = vector.load %arg7[%c0_18, %c0_19] : memref<1x1xf32, #tpu.memory_space<vmem>>, vector<1x1xf32>
    %63 = vector.shape_cast %11 : vector<16x4xf32> to vector<1x16x4xf32>
    %cst_20 = arith.constant dense<0.000000e+00> : vector<1xf32>
    %64 = vector.multi_reduction <add>, %63, %cst_20 [1, 2] : vector<1x16x4xf32> to vector<1xf32>
    %65 = vector.shape_cast %64 : vector<1xf32> to vector<1x1x1xf32>
    %66 = vector.extract %65[0, 0, 0] : f32 from vector<1x1x1xf32>
    %67 = vector.broadcast %66 : f32 to vector<1x1xf32>
    %68 = arith.addf %62, %67 : vector<1x1xf32>
    %c0_21 = arith.constant 0 : index
    %c0_22 = arith.constant 0 : index
    %69 = vector.load %arg7[%c0_21, %c0_22] : memref<1x1xf32, #tpu.memory_space<vmem>>, vector<1x1xf32>
    tpu.vector_store %arg7[%c0_21, %c0_22], %68 {strides = array<i32>} : memref<1x1xf32, #tpu.memory_space<vmem>>, vector<1x1xf32>,
    %c0_i32_23 = arith.constant 0 : i32
    %70 = arith.cmpi eq, %arg1, %c0_i32_23 : i32
    %71 = arith.extui %70 : i1 to i32
    %c0_i32_24 = arith.constant 0 : i32
    %72 = arith.cmpi ne, %71, %c0_i32_24 : i32
    scf.if %72 {
      %c0_25 = arith.constant 0 : index
      %c0_26 = arith.constant 0 : index
      %73 = vector.load %arg6[%c0_25, %c0_26] : memref<1x1xf32, #tpu.memory_space<vmem>>, vector<1x1xf32>
      %cst_27 = arith.constant 0.000000e+00 : f32
      %74 = vector.broadcast %cst_27 : f32 to vector<1x1xf32>
      %75 = arith.subf %74, %73 : vector<1x1xf32>
      %76 = vector.shape_cast %75 : vector<1x1xf32> to vector<1x1x1xf32>
      %c0_28 = arith.constant 0 : index
      %c0_29 = arith.constant 0 : index
      %c0_30 = arith.constant 0 : index
      %77 = vector.load %arg4[%c0_28, %c0_29, %c0_30] : memref<1x1x1xf32, #tpu.memory_space<vmem>>, vector<1x1x1xf32>
      tpu.vector_store %arg4[%c0_28, %c0_29, %c0_30], %76 {strides = array<i32>} : memref<1x1x1xf32, #tpu.memory_space<vmem>>, vector<1x1x1xf32>,
      %c0_31 = arith.constant 0 : index
      %c0_32 = arith.constant 0 : index
      %78 = vector.load %arg7[%c0_31, %c0_32] : memref<1x1xf32, #tpu.memory_space<vmem>>, vector<1x1xf32>
      %79 = vector.shape_cast %78 : vector<1x1xf32> to vector<1x1x1xf32>
      %c0_33 = arith.constant 0 : index
      %c0_34 = arith.constant 0 : index
      %c0_35 = arith.constant 0 : index
      %80 = vector.load %arg5[%c0_33, %c0_34, %c0_35] : memref<1x1x1xf32, #tpu.memory_space<vmem>>, vector<1x1x1xf32>
      tpu.vector_store %arg5[%c0_33, %c0_34, %c0_35], %79 {strides = array<i32>} : memref<1x1x1xf32, #tpu.memory_space<vmem>>, vector<1x1x1xf32>,
    } else {
    }
    return
  }
  func.func @transform_0(%arg0: i32, %arg1: i32) -> (i32, i32) {
    %c1_i32 = arith.constant 1 : i32
    %0 = arith.muli %arg0, %c1_i32 : i32
    %1 = arith.addi %0, %arg1 : i32
    %c0_i32 = arith.constant 0 : i32
    %c0_i32_0 = arith.constant 0 : i32
    return %1, %c0_i32 : i32, i32
  }
  func.func @transform_1(%arg0: i32, %arg1: i32) -> (i32, i32) {
    %c1_i32 = arith.constant 1 : i32
    %0 = arith.muli %arg0, %c1_i32 : i32
    %1 = arith.addi %0, %arg1 : i32
    %c0_i32 = arith.constant 0 : i32
    %c0_i32_0 = arith.constant 0 : i32
    return %1, %c0_i32 : i32, i32
  }
  func.func @transform_2(%arg0: i32, %arg1: i32) -> (i32, i32, i32) {
    %c0_i32 = arith.constant 0 : i32
    %c0_i32_0 = arith.constant 0 : i32
    %c0_i32_1 = arith.constant 0 : i32
    return %arg0, %c0_i32, %c0_i32_0 : i32, i32, i32
  }
  func.func @transform_3(%arg0: i32, %arg1: i32) -> (i32, i32, i32) {
    %c0_i32 = arith.constant 0 : i32
    %c0_i32_0 = arith.constant 0 : i32
    %c0_i32_1 = arith.constant 0 : i32
    return %arg0, %c0_i32, %c0_i32_0 : i32, i32, i32
  }
}

</mosaic_0001>

<llo_original>
// kernel: tpu_custom_call.1
$region0: #{tpu_custom_call.1}
  #allocation0 [shape = 'u32[]', space=smem, size = 0x4, offset = 0x4, fixed_abs, tag = 'smem constant byte address 0x4 - core index']
  #allocation1 [shape = 'u32[144,128]{1,0:T(1,128)}', space=vmem, size = 0x12000, scoped, tag = 'internal scratch']
  #allocation2 [shape = 'f32[1,1]{1,0:T(1,128)}', space=vmem, size = 0x200, scoped, tag = 'scratch operand']
  #allocation3 [shape = 'f32[1,1]{1,0:T(1,128)}', space=vmem, size = 0x200, scoped, tag = 'scratch operand']
  %s0 = inlined_call_operand.vmem [shape: f32[16,128], index: 0, kind: input, shape index: {}]
  %s1 = inlined_call_operand.vmem [shape: s32[16,4], index: 1, kind: input, shape index: {}]
  %s2 = inlined_call_operand.hbm [shape: f32[1,1,1], index: 2, kind: output, shape index: {0}]
  %s3 = inlined_call_operand.hbm [shape: f32[1,1,1], index: 3, kind: output, shape index: {1}]
  %4 = xla_tuple %s2, %s3
  %s5 = sld [smem:[#allocation0]]
  $region34: #{tpu_custom_call.1} parent=0
    _
  %s7 = ssub.s32 1, %s5
  %s8 = scalar_select 0, %s7, %s5
  $region1: #{tpu_custom_call.1} parent=0
    #allocation4 [shape = 'u8[512]{0}', space=vmem, size = 0x400, scoped, tag = 'output window, operand 0, single buffered']
    #allocation5 [shape = 's32[1]{0}', space=sflag, size = 0x4, scoped, tag = 'scoped memory for tpu_custom_call.1']
    #allocation6 [shape = 'u8[512]{0}', space=vmem, size = 0x400, scoped, tag = 'output window, operand 1, single buffered']
    #allocation7 [shape = 's32[1]{0}', space=sflag, size = 0x4, scoped, tag = 'scoped memory for tpu_custom_call.1']
    %9 = vsyncpa [#allocation5], 0
    %10 = vsyncpa [#allocation7], 0
    // Predicated region
    $region2: #{tpu_custom_call.1} parent=1 // pred_check
      _
    $region3: #{tpu_custom_call.1} parent=1 // pred_check_branch
      %12 = sbr.rel (0) target = $region5
    $region4: #{tpu_custom_call.1} parent=1 // pred_region
      %s13 = sadd.s32 0, 0
      %s14 = smul.u32 2, %s13
      %p15 = scmp.lt.s32.totalorder %s14, 1
      %s16 = scalar_select %p15, %s14, 1
      %s17 = smul.addr %s16, 8
      %s18 = scalar_lea.vmem %s0, %s17
      %s19 = sadd.s32 0, 0
      %s20 = smul.u32 2, %s19
    $region5: #{tpu_custom_call.1} parent=1 // pred_fallthru
      _
    // Predicated region
    $region6: #{tpu_custom_call.1} parent=1 // pred_check
      _
    $region7: #{tpu_custom_call.1} parent=1 // pred_check_branch
      %22 = sbr.rel (0) target = $region9
    $region8: #{tpu_custom_call.1} parent=1 // pred_region
      %s23 = sadd.s32 0, 0
      %s24 = smul.u32 2, %s23
      %p25 = scmp.lt.s32.totalorder %s24, 1
      %s26 = scalar_select %p25, %s24, 1
      %s27 = smul.addr %s26, 8
      %s28 = scalar_lea.vmem %s1, %s27
      %s29 = sadd.s32 0, 0
      %s30 = smul.u32 2, %s29
    $region9: #{tpu_custom_call.1} parent=1 // pred_fallthru
      _
    %s31 = sadd.s32 0, 0
    %s32 = smul.u32 2, %s31
    %p33 = scmp.lt.s32.totalorder %s32, 1
    %s34 = scalar_select %p33, %s32, 1
    %s35 = smul.addr %s34, 8
    %s36 = scalar_lea.vmem %s0, %s35
    %s37 = sadd.s32 0, 0
    %s38 = smul.u32 2, %s37
    %p39 = scmp.lt.s32.totalorder %s38, 1
    %s40 = scalar_select %p39, %s38, 1
    %s41 = smul.addr %s40, 8
    %s42 = scalar_lea.vmem %s1, %s41
    %s43 = sadd.s32 0, 0
    %s44 = smul.u32 2, %s43
    %p45 = scmp.lt.s32.totalorder %s44, 1
    %s46 = scalar_select %p45, %s44, 1
    %s47 = smul.addr %s46, 8
    %s48 = scalar_lea.vmem %s0, %s47
    %s49 = sadd.s32 0, 0
    %s50 = smul.u32 2, %s49
    %s51 = sadd.s32 0, 0
    %s52 = smul.u32 2, %s51
    %p53 = scmp.lt.s32.totalorder %s52, 1
    %s54 = scalar_select %p53, %s52, 1
    %s55 = smul.addr %s54, 8
    %s56 = scalar_lea.vmem %s1, %s55
    %s57 = sadd.s32 0, 0
    %s58 = smul.u32 2, %s57
    %p59 = scmp.eq.s32.totalorder 0, 0
    // Predicated region
    $region10: #{tpu_custom_call.1} parent=1 // pred_check
      %p60 = pneg %p59
    $region11: #{tpu_custom_call.1} parent=1 // pred_check_branch
      %62 = sbr.rel (%p60) target = $region13
    $region12: #{tpu_custom_call.1} parent=1 // pred_region
      %vm63 = vcmask 0
      %64 = vst.msk [vmem:[#allocation2] sm:$0x1] %vm63, 0.0
      %65 = vst.msk [vmem:[#allocation3] sm:$0x1] %vm63, 0.0
    $region13: #{tpu_custom_call.1} parent=1 // pred_fallthru
      _
    %v66 = vld [vmem:[%s48] sm:$0xff]
    %v67 = vld [vmem:[%s48 + $0x8] sm:$0xff]
    %v68 = vld [vmem:[%s56] sm:$0xff]
    %v69 = vld [vmem:[%s56 + $0x8] sm:$0xff]
    %v70 = vshra.s32 %v68, 16
    %v71 = vshra.s32 %v69, 16
    %v72 = vand.u32 %v68, 65535
    %v73 = vand.u32 %v69, 65535
    %v74 = vshll.u32 %v72, 16
    %v75 = vshll.u32 %v73, 16
    %v78 = vlaneseq
    %v79 = vand.u32 %v78, 127
    %80 = vset.pattern.permute.xlu0 0
    %81 = vperm.xlu0 %80, %v70
    %v82 = vpop.permute.xlu0 %81
    %83 = vset.pattern.permute.xlu0 0
    %84 = vperm.xlu0 %83, %v71
    %v85 = vpop.permute.xlu0 %84
    %vm86 = vcmp.eq.s32.totalorder %v79, %v82
    %vm87 = vcmp.eq.s32.totalorder %v79, %v85
    %v88 = vsel %vm86, %v66, 0.0
    %v89 = vsel %vm87, %v67, 0.0
    %90 = vadd.xlane.f32.xlu0 %v88
    %v91 = vpop.xlane.xlu0 %90
    %92 = vadd.xlane.f32.xlu0 %v89
    %v93 = vpop.xlane.xlu0 %92
    %v94 = vmul.f32 %v91, %v74
    %v95 = vmul.f32 %v93, %v75
    %v96 = vadd.f32 %v94, 0.0
    %v97 = vadd.f32 %v95, 0.0
    %98 = vset.pattern.permute.xlu0 1
    %99 = vperm.xlu0 %98, %v70
    %v100 = vpop.permute.xlu0 %99
    %101 = vset.pattern.permute.xlu0 1
    %102 = vperm.xlu0 %101, %v71
    %v103 = vpop.permute.xlu0 %102
    %vm104 = vcmp.eq.s32.totalorder %v79, %v100
    %vm105 = vcmp.eq.s32.totalorder %v79, %v103
    %v106 = vsel %vm104, %v66, 0.0
    %v107 = vsel %vm105, %v67, 0.0
    %108 = vadd.xlane.f32.xlu0 %v106
    %v109 = vpop.xlane.xlu0 %108
    %110 = vadd.xlane.f32.xlu0 %v107
    %v111 = vpop.xlane.xlu0 %110
    %v112 = vmul.f32 %v109, %v74
    %v113 = vmul.f32 %v111, %v75
    %116 = vrot.lane.b32.xlu0 %v112, 127
    %v117 = vpop.permute.xlu0 %116
    %118 = vrot.lane.b32.xlu0 %v113, 127
    %v119 = vpop.permute.xlu0 %118
    %v122 = vadd.f32 %v96, %v117
    %v123 = vadd.f32 %v97, %v119
    %124 = vset.pattern.permute.xlu0 2
    %125 = vperm.xlu0 %124, %v70
    %v126 = vpop.permute.xlu0 %125
    %127 = vset.pattern.permute.xlu0 2
    %128 = vperm.xlu0 %127, %v71
    %v129 = vpop.permute.xlu0 %128
    %vm130 = vcmp.eq.s32.totalorder %v79, %v126
    %vm131 = vcmp.eq.s32.totalorder %v79, %v129
    %v132 = vsel %vm130, %v66, 0.0
    %v133 = vsel %vm131, %v67, 0.0
    %134 = vadd.xlane.f32.xlu0 %v132
    %v135 = vpop.xlane.xlu0 %134
    %136 = vadd.xlane.f32.xlu0 %v133
    %v137 = vpop.xlane.xlu0 %136
    %v138 = vmul.f32 %v135, %v74
    %v139 = vmul.f32 %v137, %v75
    %142 = vrot.lane.b32.xlu0 %v138, 126
    %v143 = vpop.permute.xlu0 %142
    %144 = vrot.lane.b32.xlu0 %v139, 126
    %v145 = vpop.permute.xlu0 %144
    %v148 = vadd.f32 %v122, %v143
    %v149 = vadd.f32 %v123, %v145
    %150 = vset.pattern.permute.xlu0 3
    %151 = vperm.xlu0 %150, %v70
    %v152 = vpop.permute.xlu0 %151
    %153 = vset.pattern.permute.xlu0 3
    %154 = vperm.xlu0 %153, %v71
    %v155 = vpop.permute.xlu0 %154
    %vm156 = vcmp.eq.s32.totalorder %v79, %v152
    %vm157 = vcmp.eq.s32.totalorder %v79, %v155
    %v158 = vsel %vm156, %v66, 0.0
    %v159 = vsel %vm157, %v67, 0.0
    %160 = vadd.xlane.f32.xlu0 %v158
    %v161 = vpop.xlane.xlu0 %160
    %162 = vadd.xlane.f32.xlu0 %v159
    %v163 = vpop.xlane.xlu0 %162
    %v164 = vmul.f32 %v161, %v74
    %v165 = vmul.f32 %v163, %v75
    %168 = vrot.lane.b32.xlu0 %v164, 125
    %v169 = vpop.permute.xlu0 %168
    %170 = vrot.lane.b32.xlu0 %v165, 125
    %v171 = vpop.permute.xlu0 %170
    %v174 = vadd.f32 %v148, %v169
    %v175 = vadd.f32 %v149, %v171
    %v176 = vld [vmem:[#allocation2] sm:$0x1]
    %vm177 = vcmask 7168
    %v178 = vsel %vm177, %v174, 0.0
    %v179 = vsel %vm177, %v175, 0.0
    %v180 = vadd.f32 %v178, %v179
    %181 = vadd.xlane.f32.xlu0 %v180
    %v182 = vpop.xlane.xlu0 %181
    %v183 = vrot.slane %v182, 4
    %v184 = vadd.f32 %v182, %v183
    %v185 = vrot.slane %v184, 2
    %v186 = vadd.f32 %v184, %v185
    %v187 = vrot.slane %v186, 1
    %v188 = vadd.f32 %v186, %v187
    %s189 = vtos %v188
    %v190 = vstv %s189
    %v191 = vadd.f32 %v176, %v190
    %vm192 = vcmask 0
    %193 = vst.msk [vmem:[#allocation2] sm:$0x1] %vm192, %v191
    %v194 = vld [vmem:[#allocation3] sm:$0x1]
    %vm195 = vcmask 31744
    %v196 = vsel %vm195, %v74, 0.0
    %v197 = vsel %vm195, %v75, 0.0
    %v198 = vadd.f32 %v196, %v197
    %199 = vadd.xlane.f32.xlu0 %v198
    %v200 = vpop.xlane.xlu0 %199
    %v201 = vrot.slane %v200, 4
    %v202 = vadd.f32 %v200, %v201
    %v203 = vrot.slane %v202, 2
    %v204 = vadd.f32 %v202, %v203
    %v205 = vrot.slane %v204, 1
    %v206 = vadd.f32 %v204, %v205
    %s207 = vtos %v206
    %v208 = vstv %s207
    %v209 = vadd.f32 %v194, %v208
    %210 = vst.msk [vmem:[#allocation3] sm:$0x1] %vm192, %v209
    // Predicated region
    $region14: #{tpu_custom_call.1} parent=1 // pred_check
      %p211 = pneg %p59
    $region15: #{tpu_custom_call.1} parent=1 // pred_check_branch
      %213 = sbr.rel (%p211) target = $region17
    $region16: #{tpu_custom_call.1} parent=1 // pred_region
      %v214 = vld [vmem:[#allocation2] sm:$0x1]
      %v215 = vsub.f32 0.0, %v214
      %216 = vst.msk [vmem:[#allocation4] sm:$0x1] %vm192, %v215
      %v217 = vld [vmem:[#allocation3] sm:$0x1]
      %218 = vst.msk [vmem:[#allocation6] sm:$0x1] %vm192, %v217
    $region17: #{tpu_custom_call.1} parent=1 // pred_fallthru
      _
    // Predicated region
    $region18: #{tpu_custom_call.1} parent=1 // pred_check
      _
    $region19: #{tpu_custom_call.1} parent=1 // pred_check_branch
      %220 = sbr.rel (0) target = $region21
    $region20: #{tpu_custom_call.1} parent=1 // pred_region
      %s222 = ssub.s32 16, 16
      %223 = vsyncadd [#allocation5], %s222
      %s225 = sshll.u32 [#allocation4], 4
      %s226 = int_to_ptr.vmem [resolvable:$true] %s225
      %228 = dma.vmem_to_hbm [thread:$0]  %s226, 16, %s2, [#allocation5]
    $region21: #{tpu_custom_call.1} parent=1 // pred_fallthru
      _
    // Predicated region
    $region22: #{tpu_custom_call.1} parent=1 // pred_check
      _
    $region23: #{tpu_custom_call.1} parent=1 // pred_check_branch
      %230 = sbr.rel (0) target = $region25
    $region24: #{tpu_custom_call.1} parent=1 // pred_region
      %s232 = ssub.s32 16, 16
      %233 = vsyncadd [#allocation7], %s232
      %s235 = sshll.u32 [#allocation6], 4
      %s236 = int_to_ptr.vmem [resolvable:$true] %s235
      %238 = dma.vmem_to_hbm [thread:$0]  %s236, 16, %s3, [#allocation7]
    $region25: #{tpu_custom_call.1} parent=1 // pred_fallthru
      _
    // Predicated region
    $region26: #{tpu_custom_call.1} parent=1 // pred_check
      _
    $region27: #{tpu_custom_call.1} parent=1 // pred_check_branch
      %240 = sbr.rel (0) target = $region29
    $region28: #{tpu_custom_call.1} parent=1 // pred_region
      %241 = dma.done [#allocation5], 16
    $region29: #{tpu_custom_call.1} parent=1 // pred_fallthru
      _
    // Predicated region
    $region30: #{tpu_custom_call.1} parent=1 // pred_check
      _
    $region31: #{tpu_custom_call.1} parent=1 // pred_check_branch
      %243 = sbr.rel (0) target = $region33
    $region32: #{tpu_custom_call.1} parent=1 // pred_region
      %244 = dma.done [#allocation7], 16
    $region33: #{tpu_custom_call.1} parent=1 // pred_fallthru
      _
    %245 = vsyncpa [#allocation5], 1
    %246 = vsyncpa [#allocation7], 1

</llo_original>
